<compile_context>
chip_gen: v7x
topology: tpu7x:2x2x1
jax: 0.10.0
libtpu: 0.0.40
codegen_flags: <defaults>
</compile_context>

<pallas_src>
import functools

import jax
import jax.numpy as jnp
from jax.experimental import pallas as pl
from jax.experimental.pallas import tpu as pltpu


def _round_up(x, m):
    return (x + m - 1) // m * m


def _vmem_limit_bytes():
    """Generation-aware VMEM budget: ~40 MiB on v7x (64 MiB phys), ~96 MiB on v5e/v6e."""
    try:
        cap = pltpu.get_tpu_info().vmem_capacity_bytes
    except Exception:
        cap = 128 * 1024 * 1024
    if cap <= 64 * 1024 * 1024:
        return 40 * 1024 * 1024
    return 96 * 1024 * 1024


def _tile_vmem_bytes(tm, tn, tk, x_isz, w_isz, o_isz):
    # double-buffered x, w, out tiles + f32 accumulator + bias slice
    return (2 * tm * tk * x_isz
            + 2 * tk * tn * w_isz
            + 2 * tm * tn * o_isz
            + tm * tn * 4
            + 2 * tn * 4)


def _quant_linear_kernel(x_ref, w_ref, b_ref, o_ref, acc_ref):
    # x_ref: (tm, tk), w_ref: (tk, tn) pre-transposed, b_ref: (1, tn),
    # o_ref: (tm, tn), acc_ref: (tm, tn) f32
    k = pl.program_id(2)

    @pl.when(k == 0)
    def _():
        acc_ref[...] = jnp.zeros_like(acc_ref)

    # Canonical [m,k] @ [k,n] — weight was transposed once at load, so no in-kernel
    # XLU transpose and no trans_b dot_general.
    acc_ref[...] += jnp.dot(x_ref[...], w_ref[...], preferred_element_type=jnp.float32)

    @pl.when(k == pl.num_programs(2) - 1)
    def _():
        # Bias added once in the f32 epilogue (v5e-friendly: elementwise math stays f32).
        o_ref[...] = (acc_ref[...] + b_ref[...].astype(jnp.float32)).astype(o_ref.dtype)


def prepare_quant_linear_params(weight, bias, *, tn=512, tk=1024):
    """One-time (parameter-load-time) layout prep for the static weight/bias.

    weight: (N, K) in PyTorch convention; bias: (N,) or None.
    Pads N/K to tile multiples and transposes the weight to (Kp, Np) so the
    per-call forward never touches the weight layout again.
    """
    N, K = weight.shape
    tn_ = min(tn, _round_up(N, 128))
    tk_ = min(tk, _round_up(K, 128))
    Np = _round_up(N, tn_)
    Kp = _round_up(K, tk_)

    w = weight
    if (Np, Kp) != (N, K):
        w = jnp.pad(w, ((0, Np - N), (0, Kp - K)))
    w_t = jnp.transpose(w)  # (Kp, Np): one-time cost, hoisted out of the forward.

    if bias is None:
        b2d = jnp.zeros((1, Np), dtype=weight.dtype)
    else:
        b2d = bias.reshape(1, N)
        if Np != N:
            b2d = jnp.pad(b2d, ((0, 0), (0, Np - N)))

    return {
        "w_t": w_t, "b2d": b2d,
        "N": N, "K": K, "Np": Np, "Kp": Kp,
        "tn": tn_, "tk": tk_,
    }


@functools.partial(jax.jit, static_argnames=("tm",))
def _quant_linear_2d(x2d, w_t, b2d, *, tm):
    """x2d: (M, K_orig); w_t: (Kp, Np) pre-padded+transposed; b2d: (1, Np)."""
    M, K = x2d.shape
    Kp, Np = w_t.shape
    out_dtype = x2d.dtype

    # Native sublane multiple for the activation dtype (8 f32 / 16 bf16 / 32 int8).
    sub = max(8, 32 // jnp.dtype(x2d.dtype).itemsize)
    tm_ = min(tm, _round_up(M, sub))

    # tn/tk were fixed at prepare time; recover them from divisibility of the padded dims.
    # (Passed implicitly: Kp is a multiple of tk_, Np a multiple of tn_. We re-derive the
    #  largest tile <= default that still divides the padded dim and fits VMEM.)
    tn_ = min(512, Np)
    while Np % tn_ != 0:
        tn_ -= 128
    tk_ = min(1024, Kp)
    while Kp % tk_ != 0:
        tk_ -= 128

    # Shrink tiles if the double-buffered working set would overflow the VMEM budget.
    limit = _vmem_limit_bytes()
    x_isz = jnp.dtype(x2d.dtype).itemsize
    w_isz = jnp.dtype(w_t.dtype).itemsize
    o_isz = jnp.dtype(out_dtype).itemsize
    while (_tile_vmem_bytes(tm_, tn_, tk_, x_isz, w_isz, o_isz) > limit - (8 << 20)
           and (tm_ > sub or tk_ > 128)):
        if tm_ > sub:
            tm_ = max(sub, _round_up(tm_ // 2, sub))
        elif tk_ > 128 and Kp % (tk_ // 2) == 0:
            tk_ //= 2
        else:
            break

    Mp = _round_up(M, tm_)

    # Only the activation needs (possible) padding in the hot path; zeros in K add nothing.
    if (Mp, Kp) != (M, K):
        x2d = jnp.pad(x2d, ((0, Mp - M), (0, Kp - K)))

    grid = (Mp // tm_, Np // tn_, Kp // tk_)

    cost = pl.CostEstimate(
        flops=2 * Mp * Np * Kp,
        bytes_accessed=(Mp * Kp * x_isz * (Np // tn_)
                        + Kp * Np * w_isz * (Mp // tm_)
                        + Mp * Np * o_isz),
        transcendentals=0,
    )

    out2d = pl.pallas_call(
        _quant_linear_kernel,
        out_shape=jax.ShapeDtypeStruct((Mp, Np), out_dtype),
        grid_spec=pltpu.PrefetchScalarGridSpec(
            num_scalar_prefetch=0,
            grid=grid,
            in_specs=[
                pl.BlockSpec((tm_, tk_), lambda i, j, k: (i, k)),  # x tile
                pl.BlockSpec((tk_, tn_), lambda i, j, k: (k, j)),  # weight tile (K, N)
                pl.BlockSpec((1, tn_), lambda i, j, k: (0, j)),    # bias slice
            ],
            out_specs=pl.BlockSpec((tm_, tn_), lambda i, j, k: (i, j)),
            scratch_shapes=[pltpu.VMEM((tm_, tn_), jnp.float32)],
        ),
        compiler_params=pltpu.CompilerParams(
            dimension_semantics=("parallel", "parallel", "arbitrary"),
            vmem_limit_bytes=limit,
        ),
        cost_estimate=cost,
    )(x2d, w_t, b2d)

    return out2d[:M, :Np]


def quant_linear(x, params, *, tm=512):
    """Pallas equivalent of F.linear(x, weight, bias) with pre-prepared params.

    x: (..., K); returns (..., N).
    """
    *lead, K = x.shape
    assert K == params["K"], "in_features mismatch"
    x2d = x.reshape(-1, K)
    out2d = _quant_linear_2d(x2d, params["w_t"], params["b2d"], tm=tm)
    return out2d[:, : params["N"]].reshape(*lead, params["N"])


def quant_linear_module(x, weight, bias, *, tm=512):
    """Convenience one-shot API mirroring QuantLinear.forward.

    Note: prefer prepare_quant_linear_params() once + quant_linear() per call so the
    static weight padding/transpose stays out of the per-forward path.
    """
    params = prepare_quant_linear_params(weight, bias)
    return quant_linear(x, params, tm=tm)


if __name__ == "__main__":
    key = jax.random.PRNGKey(0)
    k_x, k_w, k_b = jax.random.split(key, 3)

    batch, seq, in_features, out_features = 2, 8, 32, 64

    # Deterministic synthetic stand-ins for the module's quantized_weight buffer and bias.
    x = jax.random.normal(k_x, (batch, seq, in_features), dtype=jnp.float32)
    weight = jax.random.normal(k_w, (out_features, in_features), dtype=jnp.float32)
    bias = jax.random.normal(k_b, (out_features,), dtype=jnp.float32)

    # One-time weight layout prep (hoisted out of the forward), then the forward itself.
    params = prepare_quant_linear_params(weight, bias)
    out = quant_linear(x, params)
    out = jax.block_until_ready(out)

    # Sanity check against plain JAX reference (same semantics as F.linear).
    ref = x @ weight.T + bias
    assert out.shape == (batch, seq, out_features)
    assert jnp.allclose(out, ref, atol=1e-5, rtol=1e-5)

    print("KERNEL_OK")
</pallas_src>

<mosaic_0001>
module attributes {stable_mosaic.version = 11 : i64} {
  func.func @_quant_linear_kernel(%arg0: i32, %arg1: i32, %arg2: i32, %arg3: memref<16x128xf32, #tpu.memory_space<vmem>>, %arg4: memref<128x128xf32, #tpu.memory_space<vmem>>, %arg5: memref<1x128xf32, #tpu.memory_space<vmem>>, %arg6: memref<16x128xf32, #tpu.memory_space<vmem>>, %arg7: memref<16x128xf32, #tpu.memory_space<vmem>>) attributes {dimension_semantics = [#tpu.dimension_semantics<parallel>, #tpu.dimension_semantics<parallel>, #tpu.dimension_semantics<arbitrary>], iteration_bounds = array<i64: 1, 1, 1>, scalar_prefetch = 0 : i64, scratch_operands = 1 : i64, tpu.core_type = #tpu.core_type<tc>, window_params = [{transform_indices = @transform_0, window_bounds = array<i64: 16, 128>}, {transform_indices = @transform_1, window_bounds = array<i64: 128, 128>}, {transform_indices = @transform_2, window_bounds = array<i64: 1, 128>}, {transform_indices = @transform_3, window_bounds = array<i64: 16, 128>}]} {
    %c0_i32 = arith.constant 0 : i32
    %0 = arith.cmpi eq, %arg2, %c0_i32 : i32
    %1 = arith.extui %0 : i1 to i32
    %c0_i32_0 = arith.constant 0 : i32
    %2 = arith.cmpi ne, %1, %c0_i32_0 : i32
    scf.if %2 {
      %cst_10 = arith.constant 0.000000e+00 : f32
      %12 = vector.broadcast %cst_10 : f32 to vector<16x128xf32>
      %c0_11 = arith.constant 0 : index
      %c0_12 = arith.constant 0 : index
      %13 = vector.load %arg7[%c0_11, %c0_12] : memref<16x128xf32, #tpu.memory_space<vmem>>, vector<16x128xf32>
      tpu.vector_store %arg7[%c0_11, %c0_12], %12 {strides = array<i32>} : memref<16x128xf32, #tpu.memory_space<vmem>>, vector<16x128xf32>,
    } else {
    }
    %c0 = arith.constant 0 : index
    %c0_1 = arith.constant 0 : index
    %3 = vector.load %arg7[%c0, %c0_1] : memref<16x128xf32, #tpu.memory_space<vmem>>, vector<16x128xf32>
    %c0_2 = arith.constant 0 : index
    %c0_3 = arith.constant 0 : index
    %4 = vector.load %arg3[%c0_2, %c0_3] : memref<16x128xf32, #tpu.memory_space<vmem>>, vector<16x128xf32>
    %c0_4 = arith.constant 0 : index
    %c0_5 = arith.constant 0 : index
    %5 = vector.load %arg4[%c0_4, %c0_5] : memref<128x128xf32, #tpu.memory_space<vmem>>, vector<128x128xf32>
    %cst = arith.constant dense<0.000000e+00> : vector<16x128xf32>
    %6 = tpu.matmul %4, %5, %cst {dimension_numbers = #tpu.dot_dimension_numbers<[1], [0], [0], [1], [0, 0, 1, 1], [], []>} : vector<16x128xf32>, vector<128x128xf32>, vector<16x128xf32> -> vector<16x128xf32>
    %7 = arith.addf %3, %6 : vector<16x128xf32>
    %c0_6 = arith.constant 0 : index
    %c0_7 = arith.constant 0 : index
    %8 = vector.load %arg7[%c0_6, %c0_7] : memref<16x128xf32, #tpu.memory_space<vmem>>, vector<16x128xf32>
    tpu.vector_store %arg7[%c0_6, %c0_7], %7 {strides = array<i32>} : memref<16x128xf32, #tpu.memory_space<vmem>>, vector<16x128xf32>,
    %c0_i32_8 = arith.constant 0 : i32
    %9 = arith.cmpi eq, %arg2, %c0_i32_8 : i32
    %10 = arith.extui %9 : i1 to i32
    %c0_i32_9 = arith.constant 0 : i32
    %11 = arith.cmpi ne, %10, %c0_i32_9 : i32
    scf.if %11 {
      %c0_10 = arith.constant 0 : index
      %c0_11 = arith.constant 0 : index
      %12 = vector.load %arg7[%c0_10, %c0_11] : memref<16x128xf32, #tpu.memory_space<vmem>>, vector<16x128xf32>
      %c0_12 = arith.constant 0 : index
      %c0_13 = arith.constant 0 : index
      %13 = vector.load %arg5[%c0_12, %c0_13] : memref<1x128xf32, #tpu.memory_space<vmem>>, vector<1x128xf32>
      %14 = vector.broadcast %13 : vector<1x128xf32> to vector<16x128xf32>
      %15 = arith.addf %12, %14 : vector<16x128xf32>
      %c0_14 = arith.constant 0 : index
      %c0_15 = arith.constant 0 : index
      %16 = vector.load %arg6[%c0_14, %c0_15] : memref<16x128xf32, #tpu.memory_space<vmem>>, vector<16x128xf32>
      tpu.vector_store %arg6[%c0_14, %c0_15], %15 {strides = array<i32>} : memref<16x128xf32, #tpu.memory_space<vmem>>, vector<16x128xf32>,
    } else {
    }
    return
  }
  func.func @transform_0(%arg0: i32, %arg1: i32, %arg2: i32) -> (i32, i32) {
    %c0_i32 = arith.constant 0 : i32
    return %arg0, %arg2 : i32, i32
  }
  func.func @transform_1(%arg0: i32, %arg1: i32, %arg2: i32) -> (i32, i32) {
    %c0_i32 = arith.constant 0 : i32
    return %arg2, %arg1 : i32, i32
  }
  func.func @transform_2(%arg0: i32, %arg1: i32, %arg2: i32) -> (i32, i32) {
    %c0_i32 = arith.constant 0 : i32
    %c0_i32_0 = arith.constant 0 : i32
    return %c0_i32, %arg1 : i32, i32
  }
  func.func @transform_3(%arg0: i32, %arg1: i32, %arg2: i32) -> (i32, i32) {
    %c0_i32 = arith.constant 0 : i32
    return %arg0, %arg1 : i32, i32
  }
}

</mosaic_0001>

<llo_original>
// kernel: _quant_linear_2d.1
$region0: #{_quant_linear_2d.1}
  #allocation0 [shape = 'u32[]', space=smem, size = 0x4, offset = 0x4, fixed_abs, tag = 'smem constant byte address 0x4 - core index']
  #allocation1 [shape = 'u32[144,128]{1,0:T(1,128)}', space=vmem, size = 0x12000, scoped, tag = 'internal scratch']
  #allocation2 [shape = 'f32[16,128]{1,0:T(8,128)}', space=vmem, size = 0x2000, scoped, tag = 'scratch operand']
  %s0 = inlined_call_operand.hbm [shape: f32[16,128], index: 0, kind: input, shape index: {}]
  %s1 = inlined_call_operand.hbm [shape: f32[128,128], index: 1, kind: input, shape index: {}]
  %s2 = inlined_call_operand.hbm [shape: f32[1,128], index: 2, kind: input, shape index: {}]
  %s3 = inlined_call_operand.hbm [shape: f32[16,128], index: 3, kind: output, shape index: {}]
  %s4 = sld [smem:[#allocation0]]
  $region42: #{_quant_linear_2d.1} parent=0
    _
  %s6 = ssub.s32 1, %s4
  %s7 = scalar_select 0, %s6, %s4
  $region1: #{_quant_linear_2d.1} parent=0
    #allocation3 [shape = 'u8[8192]{0}', space=vmem, size = 0x2000, scoped, tag = 'input window, operand 0, single buffered']
    #allocation4 [shape = 's32[1]{0}', space=sflag, size = 0x4, scoped, tag = 'scoped memory for _quant_linear_2d.1']
    #allocation5 [shape = 's32[1]{0}', space=sflag, size = 0x4, scoped, tag = 'scoped memory for _quant_linear_2d.1']
    #allocation6 [shape = 'u8[65536]{0}', space=vmem, size = 0x10000, scoped, tag = 'input window, operand 1, single buffered']
    #allocation7 [shape = 's32[1]{0}', space=sflag, size = 0x4, scoped, tag = 'scoped memory for _quant_linear_2d.1']
    #allocation8 [shape = 'u8[512]{0}', space=vmem, size = 0x400, scoped, tag = 'input window, operand 2, single buffered']
    #allocation9 [shape = 'u8[8192]{0}', space=vmem, size = 0x2000, scoped, tag = 'output window, operand 0, single buffered']
    %8 = vsyncpa [#allocation4], 0
    %9 = vsyncpa [#allocation7], 0
    %10 = vsyncpa [#allocation5], 0
    // Predicated region
    $region2: #{_quant_linear_2d.1} parent=1 // pred_check
      _
    $region3: #{_quant_linear_2d.1} parent=1 // pred_check_branch
      %12 = sbr.rel (0) target = $region5
    $region4: #{_quant_linear_2d.1} parent=1 // pred_region
      %s14 = ssub.s32 256, 256
      %15 = vsyncadd [#allocation4], %s14
      %s16 = sshll.u32 [#allocation3], 4
      %s17 = int_to_ptr.vmem [resolvable:$true] %s16
      %22 = dma.hbm_to_vmem [thread:$0]  %s0, 256, %s17, [#allocation4], 128, 128, 8
    $region5: #{_quant_linear_2d.1} parent=1 // pred_fallthru
      _
    // Predicated region
    $region6: #{_quant_linear_2d.1} parent=1 // pred_check
      _
    $region7: #{_quant_linear_2d.1} parent=1 // pred_check_branch
      %24 = sbr.rel (0) target = $region9
    $region8: #{_quant_linear_2d.1} parent=1 // pred_region
      %s26 = ssub.s32 2048, 2048
      %27 = vsyncadd [#allocation7], %s26
      %s28 = sshll.u32 [#allocation6], 4
      %s29 = int_to_ptr.vmem [resolvable:$true] %s28
      %34 = dma.hbm_to_vmem [thread:$0]  %s1, 2048, %s29, [#allocation7], 128, 128, 8
    $region9: #{_quant_linear_2d.1} parent=1 // pred_fallthru
      _
    // Predicated region
    $region10: #{_quant_linear_2d.1} parent=1 // pred_check
      _
    $region11: #{_quant_linear_2d.1} parent=1 // pred_check_branch
      %36 = sbr.rel (0) target = $region13
    $region12: #{_quant_linear_2d.1} parent=1 // pred_region
      %s38 = ssub.s32 16, 16
      %39 = vsyncadd [#allocation7], %s38
      %s41 = sshll.u32 [#allocation8], 4
      %s42 = int_to_ptr.vmem [resolvable:$true] %s41
      %44 = dma.hbm_to_vmem [thread:$0]  %s2, 16, %s42, [#allocation7]
    $region13: #{_quant_linear_2d.1} parent=1 // pred_fallthru
      _
    // Predicated region
    $region14: #{_quant_linear_2d.1} parent=1 // pred_check
      _
    $region15: #{_quant_linear_2d.1} parent=1 // pred_check_branch
      %46 = sbr.rel (0) target = $region17
    $region16: #{_quant_linear_2d.1} parent=1 // pred_region
      %47 = dma.done [#allocation4], 256
    $region17: #{_quant_linear_2d.1} parent=1 // pred_fallthru
      _
    // Predicated region
    $region18: #{_quant_linear_2d.1} parent=1 // pred_check
      _
    $region19: #{_quant_linear_2d.1} parent=1 // pred_check_branch
      %49 = sbr.rel (0) target = $region21
    $region20: #{_quant_linear_2d.1} parent=1 // pred_region
      %50 = dma.done [#allocation7], 2048
    $region21: #{_quant_linear_2d.1} parent=1 // pred_fallthru
      _
    // Predicated region
    $region22: #{_quant_linear_2d.1} parent=1 // pred_check
      _
    $region23: #{_quant_linear_2d.1} parent=1 // pred_check_branch
      %52 = sbr.rel (0) target = $region25
    $region24: #{_quant_linear_2d.1} parent=1 // pred_region
      %53 = dma.done [#allocation7], 16
    $region25: #{_quant_linear_2d.1} parent=1 // pred_fallthru
      _
    %p54 = scmp.eq.s32.totalorder 0, 0
    // Predicated region
    $region26: #{_quant_linear_2d.1} parent=1 // pred_check
      %p55 = pneg %p54
    $region27: #{_quant_linear_2d.1} parent=1 // pred_check_branch
      %57 = sbr.rel (%p55) target = $region29
    $region28: #{_quant_linear_2d.1} parent=1 // pred_region
      %58 = vst [vmem:[#allocation2] sm:$0xff] 0.0
      %59 = vst [vmem:[#allocation2 + $0x8] sm:$0xff] 0.0
    $region29: #{_quant_linear_2d.1} parent=1 // pred_fallthru
      _
    %v60 = vld [vmem:[#allocation2] sm:$0xff]
    %v61 = vld [vmem:[#allocation2 + $0x8] sm:$0xff]
    %v62 = vld [vmem:[#allocation3] sm:$0xff]
    %v63 = vld [vmem:[#allocation3 + $0x8] sm:$0xff]
    %v64 = vld [vmem:[#allocation6] sm:$0xff]
    %v65 = vld [vmem:[#allocation6 + $0x8] sm:$0xff]
    %v66 = vld [vmem:[#allocation6 + $0x10] sm:$0xff]
    %v67 = vld [vmem:[#allocation6 + $0x18] sm:$0xff]
    %v68 = vld [vmem:[#allocation6 + $0x20] sm:$0xff]
    %v69 = vld [vmem:[#allocation6 + $0x28] sm:$0xff]
    %v70 = vld [vmem:[#allocation6 + $0x30] sm:$0xff]
    %v71 = vld [vmem:[#allocation6 + $0x38] sm:$0xff]
    %v72 = vld [vmem:[#allocation6 + $0x40] sm:$0xff]
    %v73 = vld [vmem:[#allocation6 + $0x48] sm:$0xff]
    %v74 = vld [vmem:[#allocation6 + $0x50] sm:$0xff]
    %v75 = vld [vmem:[#allocation6 + $0x58] sm:$0xff]
    %v76 = vld [vmem:[#allocation6 + $0x60] sm:$0xff]
    %v77 = vld [vmem:[#allocation6 + $0x68] sm:$0xff]
    %v78 = vld [vmem:[#allocation6 + $0x70] sm:$0xff]
    %v79 = vld [vmem:[#allocation6 + $0x78] sm:$0xff]
    %80 = vmatprep.subr.mxu0 0.0
    %81 = vmatpush1.msra.mxu0 %v64
    %82 = vmatprep.subr.mxu0 0.0
    %83 = vmatpush1.msra.mxu0 %v65
    %84 = vmatprep.subr.mxu0 0.0
    %85 = vmatpush1.msra.mxu0 %v66
    %86 = vmatprep.subr.mxu0 0.0
    %87 = vmatpush1.msra.mxu0 %v67
    %88 = vmatprep.subr.mxu0 0.0
    %89 = vmatpush1.msra.mxu0 %v68
    %90 = vmatprep.subr.mxu0 0.0
    %91 = vmatpush1.msra.mxu0 %v69
    %92 = vmatprep.subr.mxu0 0.0
    %93 = vmatpush1.msra.mxu0 %v70
    %94 = vmatprep.subr.mxu0 0.0
    %95 = vmatpush1.msra.mxu0 %v71
    %96 = vmatprep.subr.mxu0 0.0
    %97 = vmatpush1.msra.mxu0 %v72
    %98 = vmatprep.subr.mxu0 0.0
    %99 = vmatpush1.msra.mxu0 %v73
    %100 = vmatprep.subr.mxu0 0.0
    %101 = vmatpush1.msra.mxu0 %v74
    %102 = vmatprep.subr.mxu0 0.0
    %103 = vmatpush1.msra.mxu0 %v75
    %104 = vmatprep.subr.mxu0 0.0
    %105 = vmatpush1.msra.mxu0 %v76
    %106 = vmatprep.subr.mxu0 0.0
    %107 = vmatpush1.msra.mxu0 %v77
    %108 = vmatprep.subr.mxu0 0.0
    %109 = vmatpush1.msra.mxu0 %v78
    %110 = vmatprep.subr.mxu0 0.0
    %111 = vmatpush1.msra.mxu0 %v79
    %112 = vmatprep.subr.mxu0 0.0
    %113 = vmatpush1.msra.mxu0 0.0
    %114 = vmatprep.subr.mxu0 0.0
    %115 = vmatpush1.msra.mxu0 0.0
    %116 = vmatprep.subr.mxu0 0.0
    %117 = vmatpush1.msra.mxu0 0.0
    %118 = vmatprep.subr.mxu0 0.0
    %119 = vmatpush1.msra.mxu0 0.0
    %120 = vmatprep.subr.mxu0 0.0
    %121 = vmatpush1.msra.mxu0 0.0
    %122 = vmatprep.subr.mxu0 0.0
    %123 = vmatpush1.msra.mxu0 0.0
    %124 = vmatprep.subr.mxu0 0.0
    %125 = vmatpush1.msra.mxu0 0.0
    %126 = vmatprep.subr.mxu0 0.0
    %127 = vmatpush1.msra.mxu0 0.0
    %128 = vmatprep.subr.mxu0 0.0
    %129 = vmatpush1.msra.mxu0 0.0
    %130 = vmatprep.subr.mxu0 0.0
    %131 = vmatpush1.msra.mxu0 0.0
    %132 = vmatprep.subr.mxu0 0.0
    %133 = vmatpush1.msra.mxu0 0.0
    %134 = vmatprep.subr.mxu0 0.0
    %135 = vmatpush1.msra.mxu0 0.0
    %136 = vmatprep.subr.mxu0 0.0
    %137 = vmatpush1.msra.mxu0 0.0
    %138 = vmatprep.subr.mxu0 0.0
    %139 = vmatpush1.msra.mxu0 0.0
    %140 = vmatprep.subr.mxu0 0.0
    %141 = vmatpush1.msra.mxu0 0.0
    %142 = vmatprep.subr.mxu0 0.0
    %143 = vmatpush1.msra.mxu0 0.0
    %144 = vmatprep.mubr.f32.mxu0 0.0
    %145 = vmatmul.mubr.f32.gmra.mrb[0].mxu0 %v62
    %v146 = vpop.f32.mrb[0].mxu0
    %v147 = vadd.f32 0.0, %v146
    %v148 = vpop.f32.mrb[0].mxu0
    %149 = vmatprep.mubr.f32.mxu0 0.0
    %150 = vmatmul.mubr.f32.gmra.mrb[0].mxu0 %v63
    %v151 = vpop.f32.mrb[0].mxu0
    %v152 = vadd.f32 0.0, %v151
    %v153 = vpop.f32.mrb[0].mxu0
    %154 = vdwg.mxu0
    %v155 = vadd.f32 %v60, %v147
    %v156 = vadd.f32 %v61, %v152
    %157 = vst [vmem:[#allocation2] sm:$0xff] %v155
    %158 = vst [vmem:[#allocation2 + $0x8] sm:$0xff] %v156
    // Predicated region
    $region30: #{_quant_linear_2d.1} parent=1 // pred_check
      %p159 = pneg %p54
    $region31: #{_quant_linear_2d.1} parent=1 // pred_check_branch
      %161 = sbr.rel (%p159) target = $region33
    $region32: #{_quant_linear_2d.1} parent=1 // pred_region
      %v162 = vld [vmem:[#allocation2] sm:$0xff]
      %v163 = vld [vmem:[#allocation2 + $0x8] sm:$0xff]
      %v164 = vld [vmem:[#allocation8] sm:$0x1]
      %v166 = vlaneseq
      %v167 = vshrl.u32 %v166, 7
      %v168 = vsub.s32 0, %v167
      %v169 = vrot.slane %v164, %v168
      %v171 = vadd.f32 %v162, %v169
      %v172 = vadd.f32 %v163, %v169
      %173 = vst [vmem:[#allocation9] sm:$0xff] %v171
      %174 = vst [vmem:[#allocation9 + $0x8] sm:$0xff] %v172
    $region33: #{_quant_linear_2d.1} parent=1 // pred_fallthru
      _
    // Predicated region
    $region34: #{_quant_linear_2d.1} parent=1 // pred_check
      _
    $region35: #{_quant_linear_2d.1} parent=1 // pred_check_branch
      %176 = sbr.rel (0) target = $region37
    $region36: #{_quant_linear_2d.1} parent=1 // pred_region
      %s178 = ssub.s32 256, 256
      %179 = vsyncadd [#allocation5], %s178
      %s180 = sshll.u32 [#allocation9], 4
      %s181 = int_to_ptr.vmem [resolvable:$true] %s180
      %186 = dma.vmem_to_hbm [thread:$0]  %s181, 256, %s3, [#allocation5], 128, 128, 8
    $region37: #{_quant_linear_2d.1} parent=1 // pred_fallthru
      _
    // Predicated region
    $region38: #{_quant_linear_2d.1} parent=1 // pred_check
      _
    $region39: #{_quant_linear_2d.1} parent=1 // pred_check_branch
      %188 = sbr.rel (0) target = $region41
    $region40: #{_quant_linear_2d.1} parent=1 // pred_region
      %189 = dma.done [#allocation5], 256
    $region41: #{_quant_linear_2d.1} parent=1 // pred_fallthru
      _
    %190 = vsyncpa [#allocation4], 1
    %191 = vsyncpa [#allocation7], 1
    %192 = vsyncpa [#allocation5], 1

</llo_original>
